<compile_context>
chip_gen: v5e
topology: v5e:2x2
jax: 0.10.0
libtpu: 0.0.40
codegen_flags: <defaults>
</compile_context>

<pallas_src>
import jax
import jax.numpy as jnp
from jax import lax
from jax.experimental import pallas as pl
from jax.experimental.pallas import tpu as pltpu


def _lstm_head_kernel(x_ref, h0_ref, c0_ref, wih_ref, whh_ref, b_ref,
                      wl_ref, bl_ref,
                      out_ref, hn_ref, cn_ref,
                      xproj_ref, hs_ref):
    """LSTM recurrence + batched projection + ReLU + log_softmax."""
    L = x_ref.shape[0]
    H = h0_ref.shape[1]

    # --- Hoisted input projection: one batched MXU matmul + bias ----------
    xproj_ref[...] = (
        jnp.dot(x_ref[...], wih_ref[...], preferred_element_type=jnp.float32)
        + b_ref[...]
    )                                                   # (L, 4H)

    # --- Serial recurrence (only h @ W_hh^T + gate math on the crit path) --
    def step(t, carry):
        h, c = carry                                    # each (1, H) f32
        gates = xproj_ref[pl.ds(t, 1), :] + jnp.dot(
            h, whh_ref[...], preferred_element_type=jnp.float32)  # (1, 4H)

        # Full-width transcendentals (EUP), then cheap lane slices.
        sig = jax.nn.sigmoid(gates)
        tnh = jnp.tanh(gates)
        i_g = sig[:, 0 * H:1 * H]
        f_g = sig[:, 1 * H:2 * H]
        g_g = tnh[:, 2 * H:3 * H]
        o_g = sig[:, 3 * H:4 * H]

        c_new = f_g * c + i_g * g_g
        h_new = o_g * jnp.tanh(c_new)
        hs_ref[pl.ds(t, 1), :] = h_new                  # stash for the head
        return (h_new, c_new)

    h_fin, c_fin = lax.fori_loop(0, L, step, (h0_ref[...], c0_ref[...]),
                                 unroll=True)
    hn_ref[...] = h_fin
    cn_ref[...] = c_fin

    # --- Batched output head: one matmul + ReLU + log_softmax, one store ---
    logits = (
        jnp.dot(hs_ref[...], wl_ref[...], preferred_element_type=jnp.float32)
        + bl_ref[...]
    )                                                   # (L, V)
    act = jnp.maximum(logits, 0.0)                      # F.relu
    m = jnp.max(act, axis=-1, keepdims=True)
    lse = m + jnp.log(jnp.sum(jnp.exp(act - m), axis=-1, keepdims=True))
    out_ref[...] = act - lse                            # log_softmax (dim=-1)


def prepare_params(params):
    """One-time weight prep: transpose + cast so the forward pays nothing."""
    emb, w_ih, w_hh, b_ih, b_hh, w_lin, b_lin = params
    H = w_hh.shape[1]
    V = w_lin.shape[0]
    return (
        emb.astype(jnp.float32),                               # (Voc, E)
        jnp.asarray(w_ih.T, dtype=jnp.float32),                # (E, 4H)
        jnp.asarray(w_hh.T, dtype=jnp.float32),                # (H, 4H)
        (b_ih + b_hh).reshape(1, 4 * H).astype(jnp.float32),   # (1, 4H)
        jnp.asarray(w_lin.T, dtype=jnp.float32),               # (H, V)
        b_lin.reshape(1, V).astype(jnp.float32),               # (1, V)
    )


@jax.jit
def name_model_forward(token_ids, hidden, prep_params):
    """token_ids: (L,) int32; hidden: (h0, c0) each (1, 1, H)."""
    emb, w_ih_t, w_hh_t, bias, w_lin_t, b_lin = prep_params
    h0, c0 = hidden
    H = w_hh_t.shape[0]
    V = w_lin_t.shape[1]
    L = token_ids.shape[0]

    # Embedding gather stays in plain JAX (negligible at this size).
    # TODO(synk): fuse the gather via PrefetchScalarGridSpec if L/E grow.
    x = jnp.take(emb, token_ids, axis=0)                 # (L, E) f32
    h0f = h0.reshape(1, H).astype(jnp.float32)
    c0f = c0.reshape(1, H).astype(jnp.float32)

    vmem = pl.BlockSpec(memory_space=pltpu.MemorySpace.VMEM)
    out, h_n, c_n = pl.pallas_call(
        _lstm_head_kernel,
        out_shape=(
            jax.ShapeDtypeStruct((L, V), jnp.float32),
            jax.ShapeDtypeStruct((1, H), jnp.float32),
            jax.ShapeDtypeStruct((1, H), jnp.float32),
        ),
        in_specs=[vmem] * 8,
        out_specs=(vmem, vmem, vmem),
        scratch_shapes=[
            pltpu.VMEM((L, 4 * H), jnp.float32),          # X_proj
            pltpu.VMEM((L, H), jnp.float32),              # stacked h_t
        ],
    )(x, h0f, c0f, w_ih_t, w_hh_t, bias, w_lin_t, b_lin)

    return out, (h_n.reshape(1, 1, H), c_n.reshape(1, 1, H))


def _reference_forward(token_ids, hidden, params):
    """Pure-JAX reference mirroring the PyTorch forward."""
    emb_table, w_ih, w_hh, b_ih, b_hh, w_lin, b_lin = params
    h0, c0 = hidden
    H = w_hh.shape[1]
    x = jnp.take(emb_table, token_ids, axis=0)            # (L, E)

    def step(carry, xt):
        h, c = carry
        gates = xt @ w_ih.T + h @ w_hh.T + b_ih + b_hh
        i_g = jax.nn.sigmoid(gates[0 * H:1 * H])
        f_g = jax.nn.sigmoid(gates[1 * H:2 * H])
        g_g = jnp.tanh(gates[2 * H:3 * H])
        o_g = jax.nn.sigmoid(gates[3 * H:4 * H])
        c_new = f_g * c + i_g * g_g
        h_new = o_g * jnp.tanh(c_new)
        return (h_new, c_new), h_new

    (h_n, c_n), hs = lax.scan(step, (h0.reshape(H), c0.reshape(H)), x)
    act = jnp.maximum(hs @ w_lin.T + b_lin, 0.0)
    out = jax.nn.log_softmax(act, axis=-1)
    return out, (h_n.reshape(1, 1, H), c_n.reshape(1, 1, H))


def init_params(key, vocab_size, embedding_dim, hidden_dim):
    ks = jax.random.split(key, 7)
    s_lstm = 1.0 / jnp.sqrt(hidden_dim)
    emb = jax.random.normal(ks[0], (vocab_size, embedding_dim), jnp.float32)
    w_ih = jax.random.uniform(ks[1], (4 * hidden_dim, embedding_dim),
                              jnp.float32, -s_lstm, s_lstm)
    w_hh = jax.random.uniform(ks[2], (4 * hidden_dim, hidden_dim),
                              jnp.float32, -s_lstm, s_lstm)
    b_ih = jax.random.uniform(ks[3], (4 * hidden_dim,), jnp.float32,
                              -s_lstm, s_lstm)
    b_hh = jax.random.uniform(ks[4], (4 * hidden_dim,), jnp.float32,
                              -s_lstm, s_lstm)
    s_lin = 1.0 / jnp.sqrt(hidden_dim)
    w_lin = jax.random.uniform(ks[5], (vocab_size, hidden_dim), jnp.float32,
                               -s_lin, s_lin)
    b_lin = jax.random.uniform(ks[6], (vocab_size,), jnp.float32,
                               -s_lin, s_lin)
    return (emb, w_ih, w_hh, b_ih, b_hh, w_lin, b_lin)


if __name__ == "__main__":
    vocab_size, embedding_dim, hidden_dim, length = 32, 16, 32, 8

    key = jax.random.PRNGKey(0)
    k_par, k_tok = jax.random.split(key)
    params = init_params(k_par, vocab_size, embedding_dim, hidden_dim)
    prep = prepare_params(params)                         # one-time weight prep

    token_ids = jax.random.randint(k_tok, (length,), 0, vocab_size, jnp.int32)
    hidden = (jnp.zeros((1, 1, hidden_dim), jnp.float32),
              jnp.zeros((1, 1, hidden_dim), jnp.float32))

    out, (h_n, c_n) = name_model_forward(token_ids, hidden, prep)
    jax.block_until_ready((out, h_n, c_n))

    ref_out, (ref_h, ref_c) = _reference_forward(token_ids, hidden, params)
    assert out.shape == (length, vocab_size)
    assert h_n.shape == (1, 1, hidden_dim) and c_n.shape == (1, 1, hidden_dim)
    assert jnp.allclose(out, ref_out, atol=1e-5, rtol=1e-5)
    assert jnp.allclose(h_n, ref_h, atol=1e-5, rtol=1e-5)
    assert jnp.allclose(c_n, ref_c, atol=1e-5, rtol=1e-5)

    print("KERNEL_OK")
</pallas_src>

<mosaic_0001>
module attributes {stable_mosaic.version = 11 : i64} {
  func.func @_lstm_head_kernel(%arg0: memref<8x16xf32, #tpu.memory_space<vmem>>, %arg1: memref<1x32xf32, #tpu.memory_space<vmem>>, %arg2: memref<1x32xf32, #tpu.memory_space<vmem>>, %arg3: memref<16x128xf32, #tpu.memory_space<vmem>>, %arg4: memref<32x128xf32, #tpu.memory_space<vmem>>, %arg5: memref<1x128xf32, #tpu.memory_space<vmem>>, %arg6: memref<32x32xf32, #tpu.memory_space<vmem>>, %arg7: memref<1x32xf32, #tpu.memory_space<vmem>>, %arg8: memref<8x32xf32, #tpu.memory_space<vmem>>, %arg9: memref<1x32xf32, #tpu.memory_space<vmem>>, %arg10: memref<1x32xf32, #tpu.memory_space<vmem>>, %arg11: memref<8x128xf32, #tpu.memory_space<vmem>>, %arg12: memref<8x32xf32, #tpu.memory_space<vmem>>) attributes {dimension_semantics = [], scalar_prefetch = 0 : i64, scratch_operands = 2 : i64, tpu.core_type = #tpu.core_type<tc>} {
    %c0 = arith.constant 0 : index
    %c0_0 = arith.constant 0 : index
    %0 = vector.load %arg0[%c0, %c0_0] : memref<8x16xf32, #tpu.memory_space<vmem>>, vector<8x16xf32>
    %c0_1 = arith.constant 0 : index
    %c0_2 = arith.constant 0 : index
    %1 = vector.load %arg3[%c0_1, %c0_2] : memref<16x128xf32, #tpu.memory_space<vmem>>, vector<16x128xf32>
    %cst = arith.constant dense<0.000000e+00> : vector<8x128xf32>
    %2 = tpu.matmul %0, %1, %cst {dimension_numbers = #tpu.dot_dimension_numbers<[1], [0], [0], [1], [0, 0, 1, 1], [], []>} : vector<8x16xf32>, vector<16x128xf32>, vector<8x128xf32> -> vector<8x128xf32>
    %c0_3 = arith.constant 0 : index
    %c0_4 = arith.constant 0 : index
    %3 = vector.load %arg5[%c0_3, %c0_4] : memref<1x128xf32, #tpu.memory_space<vmem>>, vector<1x128xf32>
    %4 = vector.broadcast %3 : vector<1x128xf32> to vector<8x128xf32>
    %5 = arith.addf %2, %4 : vector<8x128xf32>
    %c0_5 = arith.constant 0 : index
    %c0_6 = arith.constant 0 : index
    %6 = vector.load %arg11[%c0_5, %c0_6] : memref<8x128xf32, #tpu.memory_space<vmem>>, vector<8x128xf32>
    tpu.vector_store %arg11[%c0_5, %c0_6], %5 {strides = array<i32>} : memref<8x128xf32, #tpu.memory_space<vmem>>, vector<8x128xf32>,
    %c0_7 = arith.constant 0 : index
    %c0_8 = arith.constant 0 : index
    %7 = vector.load %arg1[%c0_7, %c0_8] : memref<1x32xf32, #tpu.memory_space<vmem>>, vector<1x32xf32>
    %c0_9 = arith.constant 0 : index
    %c0_10 = arith.constant 0 : index
    %8 = vector.load %arg2[%c0_9, %c0_10] : memref<1x32xf32, #tpu.memory_space<vmem>>, vector<1x32xf32>
    %c0_i32 = arith.constant 0 : i32
    %9 = arith.index_cast %c0_i32 : i32 to index
    %c0_11 = arith.constant 0 : index
    %10 = vector.load %arg11[%9, %c0_11] : memref<8x128xf32, #tpu.memory_space<vmem>>, vector<1x128xf32>
    %c0_12 = arith.constant 0 : index
    %c0_13 = arith.constant 0 : index
    %11 = vector.load %arg4[%c0_12, %c0_13] : memref<32x128xf32, #tpu.memory_space<vmem>>, vector<32x128xf32>
    %cst_14 = arith.constant dense<0.000000e+00> : vector<1x128xf32>
    %12 = tpu.matmul %7, %11, %cst_14 {dimension_numbers = #tpu.dot_dimension_numbers<[1], [0], [0], [1], [0, 0, 1, 1], [], []>} : vector<1x32xf32>, vector<32x128xf32>, vector<1x128xf32> -> vector<1x128xf32>
    %13 = arith.addf %10, %12 : vector<1x128xf32>
    %14 = arith.negf %13 : vector<1x128xf32>
    %15 = math.exp %14 : vector<1x128xf32>
    %cst_15 = arith.constant 1.000000e+00 : f32
    %16 = vector.broadcast %cst_15 : f32 to vector<1x128xf32>
    %17 = arith.addf %16, %15 : vector<1x128xf32>
    %18 = arith.divf %16, %17 : vector<1x128xf32>
    %19 = math.tanh %13 : vector<1x128xf32>
    %20 = vector.extract_strided_slice %18 {offsets = [0, 0], sizes = [1, 32], strides = [1, 1]} : vector<1x128xf32> to vector<1x32xf32>
    %21 = vector.extract_strided_slice %18 {offsets = [0, 32], sizes = [1, 32], strides = [1, 1]} : vector<1x128xf32> to vector<1x32xf32>
    %22 = vector.extract_strided_slice %19 {offsets = [0, 64], sizes = [1, 32], strides = [1, 1]} : vector<1x128xf32> to vector<1x32xf32>
    %23 = vector.extract_strided_slice %18 {offsets = [0, 96], sizes = [1, 32], strides = [1, 1]} : vector<1x128xf32> to vector<1x32xf32>
    %24 = arith.mulf %21, %8 : vector<1x32xf32>
    %25 = arith.mulf %20, %22 : vector<1x32xf32>
    %26 = arith.addf %24, %25 : vector<1x32xf32>
    %27 = math.tanh %26 : vector<1x32xf32>
    %28 = arith.mulf %23, %27 : vector<1x32xf32>
    %29 = arith.index_cast %c0_i32 : i32 to index
    %c0_16 = arith.constant 0 : index
    %30 = vector.load %arg12[%29, %c0_16] : memref<8x32xf32, #tpu.memory_space<vmem>>, vector<1x32xf32>
    tpu.vector_store %arg12[%29, %c0_16], %28 {strides = array<i32>} : memref<8x32xf32, #tpu.memory_space<vmem>>, vector<1x32xf32>,
    %c1_i32 = arith.constant 1 : i32
    %31 = arith.index_cast %c1_i32 : i32 to index
    %c0_17 = arith.constant 0 : index
    %32 = vector.load %arg11[%31, %c0_17] : memref<8x128xf32, #tpu.memory_space<vmem>>, vector<1x128xf32>
    %c0_18 = arith.constant 0 : index
    %c0_19 = arith.constant 0 : index
    %33 = vector.load %arg4[%c0_18, %c0_19] : memref<32x128xf32, #tpu.memory_space<vmem>>, vector<32x128xf32>
    %cst_20 = arith.constant dense<0.000000e+00> : vector<1x128xf32>
    %34 = tpu.matmul %28, %33, %cst_20 {dimension_numbers = #tpu.dot_dimension_numbers<[1], [0], [0], [1], [0, 0, 1, 1], [], []>} : vector<1x32xf32>, vector<32x128xf32>, vector<1x128xf32> -> vector<1x128xf32>
    %35 = arith.addf %32, %34 : vector<1x128xf32>
    %36 = arith.negf %35 : vector<1x128xf32>
    %37 = math.exp %36 : vector<1x128xf32>
    %cst_21 = arith.constant 1.000000e+00 : f32
    %38 = vector.broadcast %cst_21 : f32 to vector<1x128xf32>
    %39 = arith.addf %38, %37 : vector<1x128xf32>
    %40 = arith.divf %38, %39 : vector<1x128xf32>
    %41 = math.tanh %35 : vector<1x128xf32>
    %42 = vector.extract_strided_slice %40 {offsets = [0, 0], sizes = [1, 32], strides = [1, 1]} : vector<1x128xf32> to vector<1x32xf32>
    %43 = vector.extract_strided_slice %40 {offsets = [0, 32], sizes = [1, 32], strides = [1, 1]} : vector<1x128xf32> to vector<1x32xf32>
    %44 = vector.extract_strided_slice %41 {offsets = [0, 64], sizes = [1, 32], strides = [1, 1]} : vector<1x128xf32> to vector<1x32xf32>
    %45 = vector.extract_strided_slice %40 {offsets = [0, 96], sizes = [1, 32], strides = [1, 1]} : vector<1x128xf32> to vector<1x32xf32>
    %46 = arith.mulf %43, %26 : vector<1x32xf32>
    %47 = arith.mulf %42, %44 : vector<1x32xf32>
    %48 = arith.addf %46, %47 : vector<1x32xf32>
    %49 = math.tanh %48 : vector<1x32xf32>
    %50 = arith.mulf %45, %49 : vector<1x32xf32>
    %51 = arith.index_cast %c1_i32 : i32 to index
    %c0_22 = arith.constant 0 : index
    %52 = vector.load %arg12[%51, %c0_22] : memref<8x32xf32, #tpu.memory_space<vmem>>, vector<1x32xf32>
    tpu.vector_store %arg12[%51, %c0_22], %50 {strides = array<i32>} : memref<8x32xf32, #tpu.memory_space<vmem>>, vector<1x32xf32>,
    %c2_i32 = arith.constant 2 : i32
    %53 = arith.index_cast %c2_i32 : i32 to index
    %c0_23 = arith.constant 0 : index
    %54 = vector.load %arg11[%53, %c0_23] : memref<8x128xf32, #tpu.memory_space<vmem>>, vector<1x128xf32>
    %c0_24 = arith.constant 0 : index
    %c0_25 = arith.constant 0 : index
    %55 = vector.load %arg4[%c0_24, %c0_25] : memref<32x128xf32, #tpu.memory_space<vmem>>, vector<32x128xf32>
    %cst_26 = arith.constant dense<0.000000e+00> : vector<1x128xf32>
    %56 = tpu.matmul %50, %55, %cst_26 {dimension_numbers = #tpu.dot_dimension_numbers<[1], [0], [0], [1], [0, 0, 1, 1], [], []>} : vector<1x32xf32>, vector<32x128xf32>, vector<1x128xf32> -> vector<1x128xf32>
    %57 = arith.addf %54, %56 : vector<1x128xf32>
    %58 = arith.negf %57 : vector<1x128xf32>
    %59 = math.exp %58 : vector<1x128xf32>
    %cst_27 = arith.constant 1.000000e+00 : f32
    %60 = vector.broadcast %cst_27 : f32 to vector<1x128xf32>
    %61 = arith.addf %60, %59 : vector<1x128xf32>
    %62 = arith.divf %60, %61 : vector<1x128xf32>
    %63 = math.tanh %57 : vector<1x128xf32>
    %64 = vector.extract_strided_slice %62 {offsets = [0, 0], sizes = [1, 32], strides = [1, 1]} : vector<1x128xf32> to vector<1x32xf32>
    %65 = vector.extract_strided_slice %62 {offsets = [0, 32], sizes = [1, 32], strides = [1, 1]} : vector<1x128xf32> to vector<1x32xf32>
    %66 = vector.extract_strided_slice %63 {offsets = [0, 64], sizes = [1, 32], strides = [1, 1]} : vector<1x128xf32> to vector<1x32xf32>
    %67 = vector.extract_strided_slice %62 {offsets = [0, 96], sizes = [1, 32], strides = [1, 1]} : vector<1x128xf32> to vector<1x32xf32>
    %68 = arith.mulf %65, %48 : vector<1x32xf32>
    %69 = arith.mulf %64, %66 : vector<1x32xf32>
    %70 = arith.addf %68, %69 : vector<1x32xf32>
    %71 = math.tanh %70 : vector<1x32xf32>
    %72 = arith.mulf %67, %71 : vector<1x32xf32>
    %73 = arith.index_cast %c2_i32 : i32 to index
    %c0_28 = arith.constant 0 : index
    %74 = vector.load %arg12[%73, %c0_28] : memref<8x32xf32, #tpu.memory_space<vmem>>, vector<1x32xf32>
    tpu.vector_store %arg12[%73, %c0_28], %72 {strides = array<i32>} : memref<8x32xf32, #tpu.memory_space<vmem>>, vector<1x32xf32>,
    %c3_i32 = arith.constant 3 : i32
    %75 = arith.index_cast %c3_i32 : i32 to index
    %c0_29 = arith.constant 0 : index
    %76 = vector.load %arg11[%75, %c0_29] : memref<8x128xf32, #tpu.memory_space<vmem>>, vector<1x128xf32>
    %c0_30 = arith.constant 0 : index
    %c0_31 = arith.constant 0 : index
    %77 = vector.load %arg4[%c0_30, %c0_31] : memref<32x128xf32, #tpu.memory_space<vmem>>, vector<32x128xf32>
    %cst_32 = arith.constant dense<0.000000e+00> : vector<1x128xf32>
    %78 = tpu.matmul %72, %77, %cst_32 {dimension_numbers = #tpu.dot_dimension_numbers<[1], [0], [0], [1], [0, 0, 1, 1], [], []>} : vector<1x32xf32>, vector<32x128xf32>, vector<1x128xf32> -> vector<1x128xf32>
    %79 = arith.addf %76, %78 : vector<1x128xf32>
    %80 = arith.negf %79 : vector<1x128xf32>
    %81 = math.exp %80 : vector<1x128xf32>
    %cst_33 = arith.constant 1.000000e+00 : f32
    %82 = vector.broadcast %cst_33 : f32 to vector<1x128xf32>
    %83 = arith.addf %82, %81 : vector<1x128xf32>
    %84 = arith.divf %82, %83 : vector<1x128xf32>
    %85 = math.tanh %79 : vector<1x128xf32>
    %86 = vector.extract_strided_slice %84 {offsets = [0, 0], sizes = [1, 32], strides = [1, 1]} : vector<1x128xf32> to vector<1x32xf32>
    %87 = vector.extract_strided_slice %84 {offsets = [0, 32], sizes = [1, 32], strides = [1, 1]} : vector<1x128xf32> to vector<1x32xf32>
    %88 = vector.extract_strided_slice %85 {offsets = [0, 64], sizes = [1, 32], strides = [1, 1]} : vector<1x128xf32> to vector<1x32xf32>
    %89 = vector.extract_strided_slice %84 {offsets = [0, 96], sizes = [1, 32], strides = [1, 1]} : vector<1x128xf32> to vector<1x32xf32>
    %90 = arith.mulf %87, %70 : vector<1x32xf32>
    %91 = arith.mulf %86, %88 : vector<1x32xf32>
    %92 = arith.addf %90, %91 : vector<1x32xf32>
    %93 = math.tanh %92 : vector<1x32xf32>
    %94 = arith.mulf %89, %93 : vector<1x32xf32>
    %95 = arith.index_cast %c3_i32 : i32 to index
    %c0_34 = arith.constant 0 : index
    %96 = vector.load %arg12[%95, %c0_34] : memref<8x32xf32, #tpu.memory_space<vmem>>, vector<1x32xf32>
    tpu.vector_store %arg12[%95, %c0_34], %94 {strides = array<i32>} : memref<8x32xf32, #tpu.memory_space<vmem>>, vector<1x32xf32>,
    %c4_i32 = arith.constant 4 : i32
    %97 = arith.index_cast %c4_i32 : i32 to index
    %c0_35 = arith.constant 0 : index
    %98 = vector.load %arg11[%97, %c0_35] : memref<8x128xf32, #tpu.memory_space<vmem>>, vector<1x128xf32>
    %c0_36 = arith.constant 0 : index
    %c0_37 = arith.constant 0 : index
    %99 = vector.load %arg4[%c0_36, %c0_37] : memref<32x128xf32, #tpu.memory_space<vmem>>, vector<32x128xf32>
    %cst_38 = arith.constant dense<0.000000e+00> : vector<1x128xf32>
    %100 = tpu.matmul %94, %99, %cst_38 {dimension_numbers = #tpu.dot_dimension_numbers<[1], [0], [0], [1], [0, 0, 1, 1], [], []>} : vector<1x32xf32>, vector<32x128xf32>, vector<1x128xf32> -> vector<1x128xf32>
    %101 = arith.addf %98, %100 : vector<1x128xf32>
    %102 = arith.negf %101 : vector<1x128xf32>
    %103 = math.exp %102 : vector<1x128xf32>
    %cst_39 = arith.constant 1.000000e+00 : f32
    %104 = vector.broadcast %cst_39 : f32 to vector<1x128xf32>
    %105 = arith.addf %104, %103 : vector<1x128xf32>
    %106 = arith.divf %104, %105 : vector<1x128xf32>
    %107 = math.tanh %101 : vector<1x128xf32>
    %108 = vector.extract_strided_slice %106 {offsets = [0, 0], sizes = [1, 32], strides = [1, 1]} : vector<1x128xf32> to vector<1x32xf32>
    %109 = vector.extract_strided_slice %106 {offsets = [0, 32], sizes = [1, 32], strides = [1, 1]} : vector<1x128xf32> to vector<1x32xf32>
    %110 = vector.extract_strided_slice %107 {offsets = [0, 64], sizes = [1, 32], strides = [1, 1]} : vector<1x128xf32> to vector<1x32xf32>
    %111 = vector.extract_strided_slice %106 {offsets = [0, 96], sizes = [1, 32], strides = [1, 1]} : vector<1x128xf32> to vector<1x32xf32>
    %112 = arith.mulf %109, %92 : vector<1x32xf32>
    %113 = arith.mulf %108, %110 : vector<1x32xf32>
    %114 = arith.addf %112, %113 : vector<1x32xf32>
    %115 = math.tanh %114 : vector<1x32xf32>
    %116 = arith.mulf %111, %115 : vector<1x32xf32>
    %117 = arith.index_cast %c4_i32 : i32 to index
    %c0_40 = arith.constant 0 : index
    %118 = vector.load %arg12[%117, %c0_40] : memref<8x32xf32, #tpu.memory_space<vmem>>, vector<1x32xf32>
    tpu.vector_store %arg12[%117, %c0_40], %116 {strides = array<i32>} : memref<8x32xf32, #tpu.memory_space<vmem>>, vector<1x32xf32>,
    %c5_i32 = arith.constant 5 : i32
    %119 = arith.index_cast %c5_i32 : i32 to index
    %c0_41 = arith.constant 0 : index
    %120 = vector.load %arg11[%119, %c0_41] : memref<8x128xf32, #tpu.memory_space<vmem>>, vector<1x128xf32>
    %c0_42 = arith.constant 0 : index
    %c0_43 = arith.constant 0 : index
    %121 = vector.load %arg4[%c0_42, %c0_43] : memref<32x128xf32, #tpu.memory_space<vmem>>, vector<32x128xf32>
    %cst_44 = arith.constant dense<0.000000e+00> : vector<1x128xf32>
    %122 = tpu.matmul %116, %121, %cst_44 {dimension_numbers = #tpu.dot_dimension_numbers<[1], [0], [0], [1], [0, 0, 1, 1], [], []>} : vector<1x32xf32>, vector<32x128xf32>, vector<1x128xf32> -> vector<1x128xf32>
    %123 = arith.addf %120, %122 : vector<1x128xf32>
    %124 = arith.negf %123 : vector<1x128xf32>
    %125 = math.exp %124 : vector<1x128xf32>
    %cst_45 = arith.constant 1.000000e+00 : f32
    %126 = vector.broadcast %cst_45 : f32 to vector<1x128xf32>
    %127 = arith.addf %126, %125 : vector<1x128xf32>
    %128 = arith.divf %126, %127 : vector<1x128xf32>
    %129 = math.tanh %123 : vector<1x128xf32>
    %130 = vector.extract_strided_slice %128 {offsets = [0, 0], sizes = [1, 32], strides = [1, 1]} : vector<1x128xf32> to vector<1x32xf32>
    %131 = vector.extract_strided_slice %128 {offsets = [0, 32], sizes = [1, 32], strides = [1, 1]} : vector<1x128xf32> to vector<1x32xf32>
    %132 = vector.extract_strided_slice %129 {offsets = [0, 64], sizes = [1, 32], strides = [1, 1]} : vector<1x128xf32> to vector<1x32xf32>
    %133 = vector.extract_strided_slice %128 {offsets = [0, 96], sizes = [1, 32], strides = [1, 1]} : vector<1x128xf32> to vector<1x32xf32>
    %134 = arith.mulf %131, %114 : vector<1x32xf32>
    %135 = arith.mulf %130, %132 : vector<1x32xf32>
    %136 = arith.addf %134, %135 : vector<1x32xf32>
    %137 = math.tanh %136 : vector<1x32xf32>
    %138 = arith.mulf %133, %137 : vector<1x32xf32>
    %139 = arith.index_cast %c5_i32 : i32 to index
    %c0_46 = arith.constant 0 : index
    %140 = vector.load %arg12[%139, %c0_46] : memref<8x32xf32, #tpu.memory_space<vmem>>, vector<1x32xf32>
    tpu.vector_store %arg12[%139, %c0_46], %138 {strides = array<i32>} : memref<8x32xf32, #tpu.memory_space<vmem>>, vector<1x32xf32>,
    %c6_i32 = arith.constant 6 : i32
    %141 = arith.index_cast %c6_i32 : i32 to index
    %c0_47 = arith.constant 0 : index
    %142 = vector.load %arg11[%141, %c0_47] : memref<8x128xf32, #tpu.memory_space<vmem>>, vector<1x128xf32>
    %c0_48 = arith.constant 0 : index
    %c0_49 = arith.constant 0 : index
    %143 = vector.load %arg4[%c0_48, %c0_49] : memref<32x128xf32, #tpu.memory_space<vmem>>, vector<32x128xf32>
    %cst_50 = arith.constant dense<0.000000e+00> : vector<1x128xf32>
    %144 = tpu.matmul %138, %143, %cst_50 {dimension_numbers = #tpu.dot_dimension_numbers<[1], [0], [0], [1], [0, 0, 1, 1], [], []>} : vector<1x32xf32>, vector<32x128xf32>, vector<1x128xf32> -> vector<1x128xf32>
    %145 = arith.addf %142, %144 : vector<1x128xf32>
    %146 = arith.negf %145 : vector<1x128xf32>
    %147 = math.exp %146 : vector<1x128xf32>
    %cst_51 = arith.constant 1.000000e+00 : f32
    %148 = vector.broadcast %cst_51 : f32 to vector<1x128xf32>
    %149 = arith.addf %148, %147 : vector<1x128xf32>
    %150 = arith.divf %148, %149 : vector<1x128xf32>
    %151 = math.tanh %145 : vector<1x128xf32>
    %152 = vector.extract_strided_slice %150 {offsets = [0, 0], sizes = [1, 32], strides = [1, 1]} : vector<1x128xf32> to vector<1x32xf32>
    %153 = vector.extract_strided_slice %150 {offsets = [0, 32], sizes = [1, 32], strides = [1, 1]} : vector<1x128xf32> to vector<1x32xf32>
    %154 = vector.extract_strided_slice %151 {offsets = [0, 64], sizes = [1, 32], strides = [1, 1]} : vector<1x128xf32> to vector<1x32xf32>
    %155 = vector.extract_strided_slice %150 {offsets = [0, 96], sizes = [1, 32], strides = [1, 1]} : vector<1x128xf32> to vector<1x32xf32>
    %156 = arith.mulf %153, %136 : vector<1x32xf32>
    %157 = arith.mulf %152, %154 : vector<1x32xf32>
    %158 = arith.addf %156, %157 : vector<1x32xf32>
    %159 = math.tanh %158 : vector<1x32xf32>
    %160 = arith.mulf %155, %159 : vector<1x32xf32>
    %161 = arith.index_cast %c6_i32 : i32 to index
    %c0_52 = arith.constant 0 : index
    %162 = vector.load %arg12[%161, %c0_52] : memref<8x32xf32, #tpu.memory_space<vmem>>, vector<1x32xf32>
    tpu.vector_store %arg12[%161, %c0_52], %160 {strides = array<i32>} : memref<8x32xf32, #tpu.memory_space<vmem>>, vector<1x32xf32>,
    %c7_i32 = arith.constant 7 : i32
    %163 = arith.index_cast %c7_i32 : i32 to index
    %c0_53 = arith.constant 0 : index
    %164 = vector.load %arg11[%163, %c0_53] : memref<8x128xf32, #tpu.memory_space<vmem>>, vector<1x128xf32>
    %c0_54 = arith.constant 0 : index
    %c0_55 = arith.constant 0 : index
    %165 = vector.load %arg4[%c0_54, %c0_55] : memref<32x128xf32, #tpu.memory_space<vmem>>, vector<32x128xf32>
    %cst_56 = arith.constant dense<0.000000e+00> : vector<1x128xf32>
    %166 = tpu.matmul %160, %165, %cst_56 {dimension_numbers = #tpu.dot_dimension_numbers<[1], [0], [0], [1], [0, 0, 1, 1], [], []>} : vector<1x32xf32>, vector<32x128xf32>, vector<1x128xf32> -> vector<1x128xf32>
    %167 = arith.addf %164, %166 : vector<1x128xf32>
    %168 = arith.negf %167 : vector<1x128xf32>
    %169 = math.exp %168 : vector<1x128xf32>
    %cst_57 = arith.constant 1.000000e+00 : f32
    %170 = vector.broadcast %cst_57 : f32 to vector<1x128xf32>
    %171 = arith.addf %170, %169 : vector<1x128xf32>
    %172 = arith.divf %170, %171 : vector<1x128xf32>
    %173 = math.tanh %167 : vector<1x128xf32>
    %174 = vector.extract_strided_slice %172 {offsets = [0, 0], sizes = [1, 32], strides = [1, 1]} : vector<1x128xf32> to vector<1x32xf32>
    %175 = vector.extract_strided_slice %172 {offsets = [0, 32], sizes = [1, 32], strides = [1, 1]} : vector<1x128xf32> to vector<1x32xf32>
    %176 = vector.extract_strided_slice %173 {offsets = [0, 64], sizes = [1, 32], strides = [1, 1]} : vector<1x128xf32> to vector<1x32xf32>
    %177 = vector.extract_strided_slice %172 {offsets = [0, 96], sizes = [1, 32], strides = [1, 1]} : vector<1x128xf32> to vector<1x32xf32>
    %178 = arith.mulf %175, %158 : vector<1x32xf32>
    %179 = arith.mulf %174, %176 : vector<1x32xf32>
    %180 = arith.addf %178, %179 : vector<1x32xf32>
    %181 = math.tanh %180 : vector<1x32xf32>
    %182 = arith.mulf %177, %181 : vector<1x32xf32>
    %183 = arith.index_cast %c7_i32 : i32 to index
    %c0_58 = arith.constant 0 : index
    %184 = vector.load %arg12[%183, %c0_58] : memref<8x32xf32, #tpu.memory_space<vmem>>, vector<1x32xf32>
    tpu.vector_store %arg12[%183, %c0_58], %182 {strides = array<i32>} : memref<8x32xf32, #tpu.memory_space<vmem>>, vector<1x32xf32>,
    %c8_i32 = arith.constant 8 : i32
    %c0_59 = arith.constant 0 : index
    %c0_60 = arith.constant 0 : index
    %185 = vector.load %arg9[%c0_59, %c0_60] : memref<1x32xf32, #tpu.memory_space<vmem>>, vector<1x32xf32>
    tpu.vector_store %arg9[%c0_59, %c0_60], %182 {strides = array<i32>} : memref<1x32xf32, #tpu.memory_space<vmem>>, vector<1x32xf32>,
    %c0_61 = arith.constant 0 : index
    %c0_62 = arith.constant 0 : index
    %186 = vector.load %arg10[%c0_61, %c0_62] : memref<1x32xf32, #tpu.memory_space<vmem>>, vector<1x32xf32>
    tpu.vector_store %arg10[%c0_61, %c0_62], %180 {strides = array<i32>} : memref<1x32xf32, #tpu.memory_space<vmem>>, vector<1x32xf32>,
    %c0_63 = arith.constant 0 : index
    %c0_64 = arith.constant 0 : index
    %187 = vector.load %arg12[%c0_63, %c0_64] : memref<8x32xf32, #tpu.memory_space<vmem>>, vector<8x32xf32>
    %c0_65 = arith.constant 0 : index
    %c0_66 = arith.constant 0 : index
    %188 = vector.load %arg6[%c0_65, %c0_66] : memref<32x32xf32, #tpu.memory_space<vmem>>, vector<32x32xf32>
    %cst_67 = arith.constant dense<0.000000e+00> : vector<8x32xf32>
    %189 = tpu.matmul %187, %188, %cst_67 {dimension_numbers = #tpu.dot_dimension_numbers<[1], [0], [0], [1], [0, 0, 1, 1], [], []>} : vector<8x32xf32>, vector<32x32xf32>, vector<8x32xf32> -> vector<8x32xf32>
    %c0_68 = arith.constant 0 : index
    %c0_69 = arith.constant 0 : index
    %190 = vector.load %arg7[%c0_68, %c0_69] : memref<1x32xf32, #tpu.memory_space<vmem>>, vector<1x32xf32>
    %191 = vector.broadcast %190 : vector<1x32xf32> to vector<8x32xf32>
    %192 = arith.addf %189, %191 : vector<8x32xf32>
    %cst_70 = arith.constant 0.000000e+00 : f32
    %193 = vector.broadcast %cst_70 : f32 to vector<8x32xf32>
    %194 = arith.maximumf %192, %193 : vector<8x32xf32>
    %cst_71 = arith.constant dense<0xFF800000> : vector<8xf32>
    %195 = vector.multi_reduction <maximumf>, %194, %cst_71 [1] : vector<8x32xf32> to vector<8xf32>
    %196 = vector.shape_cast %195 : vector<8xf32> to vector<8x1xf32>
    %197 = vector.broadcast %196 : vector<8x1xf32> to vector<8x32xf32>
    %198 = arith.subf %194, %197 : vector<8x32xf32>
    %199 = math.exp %198 : vector<8x32xf32>
    %cst_72 = arith.constant dense<0.000000e+00> : vector<8xf32>
    %200 = vector.multi_reduction <add>, %199, %cst_72 [1] : vector<8x32xf32> to vector<8xf32>
    %201 = vector.shape_cast %200 : vector<8xf32> to vector<8x1xf32>
    %202 = math.log %201 : vector<8x1xf32>
    %203 = arith.addf %196, %202 : vector<8x1xf32>
    %204 = vector.broadcast %203 : vector<8x1xf32> to vector<8x32xf32>
    %205 = arith.subf %194, %204 : vector<8x32xf32>
    %c0_73 = arith.constant 0 : index
    %c0_74 = arith.constant 0 : index
    %206 = vector.load %arg8[%c0_73, %c0_74] : memref<8x32xf32, #tpu.memory_space<vmem>>, vector<8x32xf32>
    tpu.vector_store %arg8[%c0_73, %c0_74], %205 {strides = array<i32>} : memref<8x32xf32, #tpu.memory_space<vmem>>, vector<8x32xf32>,
    return
  }
}

</mosaic_0001>

<llo_original>
// kernel: name_model_forward.1
$region0: #{name_model_forward.1}
  #allocation0 [shape = 'u32[]', space=smem, size = 0x4, offset = 0x4, fixed_abs, tag = 'smem constant byte address 0x4 - core index']
  #allocation1 [shape = 'u32[72,128]{1,0:T(1,128)}', space=vmem, size = 0x9000, scoped, tag = 'internal scratch']
  #allocation2 [shape = 'f32[8,128]{1,0:T(8,128)}', space=vmem, size = 0x1000, scoped, tag = 'scratch operand']
  #allocation3 [shape = 'f32[8,32]{1,0:T(8,128)}', space=vmem, size = 0x1000, scoped, tag = 'scratch operand']
  %s0 = inlined_call_operand.vmem [shape: f32[8,16], index: 0, kind: input, shape index: {}]
  %s1 = inlined_call_operand.vmem [shape: f32[1,32], index: 1, kind: input, shape index: {}]
  %s2 = inlined_call_operand.vmem [shape: f32[1,32], index: 2, kind: input, shape index: {}]
  %s3 = inlined_call_operand.vmem [shape: f32[16,128], index: 3, kind: input, shape index: {}]
  %s4 = inlined_call_operand.vmem [shape: f32[32,128], index: 4, kind: input, shape index: {}]
  %s5 = inlined_call_operand.vmem [shape: f32[1,128], index: 5, kind: input, shape index: {}]
  %s6 = inlined_call_operand.vmem [shape: f32[32,32], index: 6, kind: input, shape index: {}]
  %s7 = inlined_call_operand.vmem [shape: f32[1,32], index: 7, kind: input, shape index: {}]
  %s8 = inlined_call_operand.hbm [shape: f32[8,32], index: 8, kind: output, shape index: {0}]
  %s9 = inlined_call_operand.hbm [shape: f32[1,32], index: 9, kind: output, shape index: {1}]
  %s10 = inlined_call_operand.hbm [shape: f32[1,32], index: 10, kind: output, shape index: {2}]
  %11 = xla_tuple %s8, %s9, %s10
  %s12 = sld [smem:[#allocation0]]
  $region58: #{name_model_forward.1} parent=0
    _
  %s14 = ssub.s32 1, %s12
  %s15 = scalar_select 0, %s14, %s12
  $region1: #{name_model_forward.1} parent=0
    #allocation4 [shape = 'u8[4096]{0}', space=vmem, size = 0x1000, scoped, tag = 'output window, operand 0, single buffered']
    #allocation5 [shape = 's32[1]{0}', space=sflag, size = 0x4, scoped, tag = 'scoped memory for name_model_forward.1']
    #allocation6 [shape = 'u8[512]{0}', space=vmem, size = 0x400, scoped, tag = 'output window, operand 1, single buffered']
    #allocation7 [shape = 's32[1]{0}', space=sflag, size = 0x4, scoped, tag = 'scoped memory for name_model_forward.1']
    #allocation8 [shape = 'u8[512]{0}', space=vmem, size = 0x400, scoped, tag = 'output window, operand 2, single buffered']
    %16 = vsyncpa [#allocation5], 0
    %17 = vsyncpa [#allocation7], 0
    // Predicated region
    $region2: #{name_model_forward.1} parent=1 // pred_check
      _
    $region3: #{name_model_forward.1} parent=1 // pred_check_branch
      %19 = sbr.rel (0) target = $region5
    $region4: #{name_model_forward.1} parent=1 // pred_region
      _
    $region5: #{name_model_forward.1} parent=1 // pred_fallthru
      _
    // Predicated region
    $region6: #{name_model_forward.1} parent=1 // pred_check
      _
    $region7: #{name_model_forward.1} parent=1 // pred_check_branch
      %21 = sbr.rel (0) target = $region9
    $region8: #{name_model_forward.1} parent=1 // pred_region
      _
    $region9: #{name_model_forward.1} parent=1 // pred_fallthru
      _
    // Predicated region
    $region10: #{name_model_forward.1} parent=1 // pred_check
      _
    $region11: #{name_model_forward.1} parent=1 // pred_check_branch
      %23 = sbr.rel (0) target = $region13
    $region12: #{name_model_forward.1} parent=1 // pred_region
      _
    $region13: #{name_model_forward.1} parent=1 // pred_fallthru
      _
    // Predicated region
    $region14: #{name_model_forward.1} parent=1 // pred_check
      _
    $region15: #{name_model_forward.1} parent=1 // pred_check_branch
      %25 = sbr.rel (0) target = $region17
    $region16: #{name_model_forward.1} parent=1 // pred_region
      _
    $region17: #{name_model_forward.1} parent=1 // pred_fallthru
      _
    // Predicated region
    $region18: #{name_model_forward.1} parent=1 // pred_check
      _
    $region19: #{name_model_forward.1} parent=1 // pred_check_branch
      %27 = sbr.rel (0) target = $region21
    $region20: #{name_model_forward.1} parent=1 // pred_region
      _
    $region21: #{name_model_forward.1} parent=1 // pred_fallthru
      _
    // Predicated region
    $region22: #{name_model_forward.1} parent=1 // pred_check
      _
    $region23: #{name_model_forward.1} parent=1 // pred_check_branch
      %29 = sbr.rel (0) target = $region25
    $region24: #{name_model_forward.1} parent=1 // pred_region
      _
    $region25: #{name_model_forward.1} parent=1 // pred_fallthru
      _
    // Predicated region
    $region26: #{name_model_forward.1} parent=1 // pred_check
      _
    $region27: #{name_model_forward.1} parent=1 // pred_check_branch
      %31 = sbr.rel (0) target = $region29
    $region28: #{name_model_forward.1} parent=1 // pred_region
      _
    $region29: #{name_model_forward.1} parent=1 // pred_fallthru
      _
    // Predicated region
    $region30: #{name_model_forward.1} parent=1 // pred_check
      _
    $region31: #{name_model_forward.1} parent=1 // pred_check_branch
      %33 = sbr.rel (0) target = $region33
    $region32: #{name_model_forward.1} parent=1 // pred_region
      _
    $region33: #{name_model_forward.1} parent=1 // pred_fallthru
      _
    %v34 = vld [vmem:[%s0] sm:$0xff]
    %v35 = vld [vmem:[%s3] sm:$0xff]
    %v36 = vld [vmem:[%s3 + $0x8] sm:$0xff]
    %v37 = vld [vmem:[%s5] sm:$0x1]
    %v39 = vperm.slane %v37, 0
    %vm41 = vcmask 130048
    %v43 = vsel %vm41, %v34, 0
    %45 = vmatpush.msra.mxu0 0.0
    %46 = vmatpush.msra.mxu0 0.0
    %47 = vmatpush.msra.mxu0 0.0
    %48 = vmatpush.msra.mxu0 0.0
    %49 = vmatpush.msra.mxu0 0.0
    %50 = vmatpush.msra.mxu0 0.0
    %51 = vmatpush.msra.mxu0 0.0
    %52 = vmatpush.msra.mxu0 0.0
    %53 = vmatpush.msra.mxu0 0.0
    %54 = vmatpush.msra.mxu0 0.0
    %55 = vmatpush.msra.mxu0 0.0
    %56 = vmatpush.msra.mxu0 0.0
    %57 = vmatpush.msra.mxu0 0.0
    %58 = vmatpush.msra.mxu0 0.0
    %59 = vmatpush.msra.mxu0 %v36
    %60 = vmatpush.msra.mxu0 %v35
    %61 = vmatmul.f32.gmra.mxu0 %v43
    %v62 = vpop.f32.mrf.mxu0
    %v63 = vadd.f32 %v39, %v62
    %64 = vdwg.mxu0
    %65 = vst [vmem:[#allocation2] sm:$0xff] %v63
    %v66 = vld [vmem:[%s1] sm:$0x1]
    %v67 = vld [vmem:[%s2] sm:$0x1]
    %v68 = vld [vmem:[#allocation2] sm:$0x1]
    %v69 = vld [vmem:[%s4] sm:$0xff]
    %v70 = vld [vmem:[%s4 + $0x8] sm:$0xff]
    %v71 = vld [vmem:[%s4 + $0x10] sm:$0xff]
    %v72 = vld [vmem:[%s4 + $0x18] sm:$0xff]
    %vm73 = vcmask 261120
    %v75 = vsel %vm73, %v66, 0
    %77 = vmatpush.msra.mxu0 0.0
    %78 = vmatpush.msra.mxu0 0.0
    %79 = vmatpush.msra.mxu0 0.0
    %80 = vmatpush.msra.mxu0 0.0
    %81 = vmatpush.msra.mxu0 0.0
    %82 = vmatpush.msra.mxu0 0.0
    %83 = vmatpush.msra.mxu0 0.0
    %84 = vmatpush.msra.mxu0 0.0
    %85 = vmatpush.msra.mxu0 0.0
    %86 = vmatpush.msra.mxu0 0.0
    %87 = vmatpush.msra.mxu0 0.0
    %88 = vmatpush.msra.mxu0 0.0
    %89 = vmatpush.msra.mxu0 %v72
    %90 = vmatpush.msra.mxu0 %v71
    %91 = vmatpush.msra.mxu0 %v70
    %92 = vmatpush.msra.mxu0 %v69
    %93 = vmatmul.f32.gmra.mxu0 %v75
    %v94 = vpop.f32.mrf.mxu0
    %v95 = vadd.f32 0.0, %v94
    %96 = vdwg.mxu0
    %v97 = vadd.f32 %v68, %v95
    %v98 = vxor.u32 %v97, 2147483648
    %v99 = vmul.f32 %v98, 1.442695
    %v100 = vpow.pop %v99
    %v101 = vadd.f32 %v100, 1.0
    %v102 = vrcp.pop %v101
    %v103 = vmul.f32 %v101, %v102
    %v104 = vsub.f32 1.0, %v103
    %v105 = vmul.f32 %v102, %v104
    %v106 = vadd.f32 %v102, %v105
    %vm107 = vweird.f32 %v101
    %vm108 = vweird.f32 %v102
    %vm109 = vmor %vm107, %vm108
    %v110 = vsel %vm109, %v102, %v106
    %v111 = vand.u32 2147483647, %v101
    %vm112 = vcmp.eq.f32.partialorder %v111, 8.507059e+37
    %v113 = vand.u32 %v101, 2147483648
    %v114 = vor.u32 1.1754944e-38, %v113
    %v115 = vsel %vm112, %v114, %v110
    %v116 = vmul.f32 1.0, %v115
    %v117 = vtanh.pop %v97
    %v119 = vperm.slane %v67, 0
    %120 = vrot.lane.b32.xlu0 %v119, 32
    %v121 = vpop.permute.xlu0 %120
    %v123 = vmul.f32 %v116, %v121
    %125 = vrot.lane.b32.xlu0 %v117, 64
    %v126 = vpop.permute.xlu0 %125
    %v128 = vmul.f32 %v116, %v126
    %130 = vrot.lane.b32.xlu0 %v128, 32
    %v131 = vpop.permute.xlu0 %130
    %v133 = vadd.f32 %v123, %v131
    %v134 = vtanh.pop %v133
    %136 = vrot.lane.b32.xlu0 %v134, 64
    %v137 = vpop.permute.xlu0 %136
    %v139 = vmul.f32 %v116, %v137
    %141 = vrot.lane.b32.xlu0 %v139, 32
    %v142 = vpop.permute.xlu0 %141
    %vm144 = vcmask 253952
    %145 = vst.msk [vmem:[#allocation3] sm:$0x1] %vm144, %v142
    %v146 = vld [vmem:[#allocation2 + $0x1] sm:$0x1]
    %v147 = vld [vmem:[%s4] sm:$0xff]
    %v148 = vld [vmem:[%s4 + $0x8] sm:$0xff]
    %v149 = vld [vmem:[%s4 + $0x10] sm:$0xff]
    %v150 = vld [vmem:[%s4 + $0x18] sm:$0xff]
    %v151 = vsel %vm73, %v142, 0
    %153 = vmatpush.msra.mxu0 0.0
    %154 = vmatpush.msra.mxu0 0.0
    %155 = vmatpush.msra.mxu0 0.0
    %156 = vmatpush.msra.mxu0 0.0
    %157 = vmatpush.msra.mxu0 0.0
    %158 = vmatpush.msra.mxu0 0.0
    %159 = vmatpush.msra.mxu0 0.0
    %160 = vmatpush.msra.mxu0 0.0
    %161 = vmatpush.msra.mxu0 0.0
    %162 = vmatpush.msra.mxu0 0.0
    %163 = vmatpush.msra.mxu0 0.0
    %164 = vmatpush.msra.mxu0 0.0
    %165 = vmatpush.msra.mxu0 %v150
    %166 = vmatpush.msra.mxu0 %v149
    %167 = vmatpush.msra.mxu0 %v148
    %168 = vmatpush.msra.mxu0 %v147
    %169 = vmatmul.f32.gmra.mxu0 %v151
    %v170 = vpop.f32.mrf.mxu0
    %v171 = vadd.f32 0.0, %v170
    %172 = vdwg.mxu0
    %v173 = vadd.f32 %v146, %v171
    %v174 = vxor.u32 %v173, 2147483648
    %v175 = vmul.f32 %v174, 1.442695
    %v176 = vpow.pop %v175
    %v177 = vadd.f32 %v176, 1.0
    %v178 = vrcp.pop %v177
    %v179 = vmul.f32 %v177, %v178
    %v180 = vsub.f32 1.0, %v179
    %v181 = vmul.f32 %v178, %v180
    %v182 = vadd.f32 %v178, %v181
    %vm183 = vweird.f32 %v177
    %vm184 = vweird.f32 %v178
    %vm185 = vmor %vm183, %vm184
    %v186 = vsel %vm185, %v178, %v182
    %v187 = vand.u32 2147483647, %v177
    %vm188 = vcmp.eq.f32.partialorder %v187, 8.507059e+37
    %v189 = vand.u32 %v177, 2147483648
    %v190 = vor.u32 1.1754944e-38, %v189
    %v191 = vsel %vm188, %v190, %v186
    %v192 = vmul.f32 1.0, %v191
    %v193 = vtanh.pop %v173
    %v194 = vmul.f32 %v192, %v133
    %196 = vrot.lane.b32.xlu0 %v193, 64
    %v197 = vpop.permute.xlu0 %196
    %v199 = vmul.f32 %v192, %v197
    %201 = vrot.lane.b32.xlu0 %v199, 32
    %v202 = vpop.permute.xlu0 %201
    %v204 = vadd.f32 %v194, %v202
    %v205 = vtanh.pop %v204
    %207 = vrot.lane.b32.xlu0 %v205, 64
    %v208 = vpop.permute.xlu0 %207
    %v210 = vmul.f32 %v192, %v208
    %212 = vrot.lane.b32.xlu0 %v210, 32
    %v213 = vpop.permute.xlu0 %212
    %215 = vst.msk [vmem:[#allocation3 + $0x1] sm:$0x1] %vm144, %v213
    %v216 = vld [vmem:[#allocation2 + $0x2] sm:$0x1]
    %v217 = vld [vmem:[%s4] sm:$0xff]
    %v218 = vld [vmem:[%s4 + $0x8] sm:$0xff]
    %v219 = vld [vmem:[%s4 + $0x10] sm:$0xff]
    %v220 = vld [vmem:[%s4 + $0x18] sm:$0xff]
    %v221 = vsel %vm73, %v213, 0
    %223 = vmatpush.msra.mxu0 0.0
    %224 = vmatpush.msra.mxu0 0.0
    %225 = vmatpush.msra.mxu0 0.0
    %226 = vmatpush.msra.mxu0 0.0
    %227 = vmatpush.msra.mxu0 0.0
    %228 = vmatpush.msra.mxu0 0.0
    %229 = vmatpush.msra.mxu0 0.0
    %230 = vmatpush.msra.mxu0 0.0
    %231 = vmatpush.msra.mxu0 0.0
    %232 = vmatpush.msra.mxu0 0.0
    %233 = vmatpush.msra.mxu0 0.0
    %234 = vmatpush.msra.mxu0 0.0
    %235 = vmatpush.msra.mxu0 %v220
    %236 = vmatpush.msra.mxu0 %v219
    %237 = vmatpush.msra.mxu0 %v218
    %238 = vmatpush.msra.mxu0 %v217
    %239 = vmatmul.f32.gmra.mxu0 %v221
    %v240 = vpop.f32.mrf.mxu0
    %v241 = vadd.f32 0.0, %v240
    %242 = vdwg.mxu0
    %v243 = vadd.f32 %v216, %v241
    %v244 = vxor.u32 %v243, 2147483648
    %v245 = vmul.f32 %v244, 1.442695
    %v246 = vpow.pop %v245
    %v247 = vadd.f32 %v246, 1.0
    %v248 = vrcp.pop %v247
    %v249 = vmul.f32 %v247, %v248
    %v250 = vsub.f32 1.0, %v249
    %v251 = vmul.f32 %v248, %v250
    %v252 = vadd.f32 %v248, %v251
    %vm253 = vweird.f32 %v247
    %vm254 = vweird.f32 %v248
    %vm255 = vmor %vm253, %vm254
    %v256 = vsel %vm255, %v248, %v252
    %v257 = vand.u32 2147483647, %v247
    %vm258 = vcmp.eq.f32.partialorder %v257, 8.507059e+37
    %v259 = vand.u32 %v247, 2147483648
    %v260 = vor.u32 1.1754944e-38, %v259
    %v261 = vsel %vm258, %v260, %v256
    %v262 = vmul.f32 1.0, %v261
    %v263 = vtanh.pop %v243
    %v264 = vmul.f32 %v262, %v204
    %266 = vrot.lane.b32.xlu0 %v263, 64
    %v267 = vpop.permute.xlu0 %266
    %v269 = vmul.f32 %v262, %v267
    %271 = vrot.lane.b32.xlu0 %v269, 32
    %v272 = vpop.permute.xlu0 %271
    %v274 = vadd.f32 %v264, %v272
    %v275 = vtanh.pop %v274
    %277 = vrot.lane.b32.xlu0 %v275, 64
    %v278 = vpop.permute.xlu0 %277
    %v280 = vmul.f32 %v262, %v278
    %282 = vrot.lane.b32.xlu0 %v280, 32
    %v283 = vpop.permute.xlu0 %282
    %285 = vst.msk [vmem:[#allocation3 + $0x2] sm:$0x1] %vm144, %v283
    %v286 = vld [vmem:[#allocation2 + $0x3] sm:$0x1]
    %v287 = vld [vmem:[%s4] sm:$0xff]
    %v288 = vld [vmem:[%s4 + $0x8] sm:$0xff]
    %v289 = vld [vmem:[%s4 + $0x10] sm:$0xff]
    %v290 = vld [vmem:[%s4 + $0x18] sm:$0xff]
    %v291 = vsel %vm73, %v283, 0
    %293 = vmatpush.msra.mxu0 0.0
    %294 = vmatpush.msra.mxu0 0.0
    %295 = vmatpush.msra.mxu0 0.0
    %296 = vmatpush.msra.mxu0 0.0
    %297 = vmatpush.msra.mxu0 0.0
    %298 = vmatpush.msra.mxu0 0.0
    %299 = vmatpush.msra.mxu0 0.0
    %300 = vmatpush.msra.mxu0 0.0
    %301 = vmatpush.msra.mxu0 0.0
    %302 = vmatpush.msra.mxu0 0.0
    %303 = vmatpush.msra.mxu0 0.0
    %304 = vmatpush.msra.mxu0 0.0
    %305 = vmatpush.msra.mxu0 %v290
    %306 = vmatpush.msra.mxu0 %v289
    %307 = vmatpush.msra.mxu0 %v288
    %308 = vmatpush.msra.mxu0 %v287
    %309 = vmatmul.f32.gmra.mxu0 %v291
    %v310 = vpop.f32.mrf.mxu0
    %v311 = vadd.f32 0.0, %v310
    %312 = vdwg.mxu0
    %v313 = vadd.f32 %v286, %v311
    %v314 = vxor.u32 %v313, 2147483648
    %v315 = vmul.f32 %v314, 1.442695
    %v316 = vpow.pop %v315
    %v317 = vadd.f32 %v316, 1.0
    %v318 = vrcp.pop %v317
    %v319 = vmul.f32 %v317, %v318
    %v320 = vsub.f32 1.0, %v319
    %v321 = vmul.f32 %v318, %v320
    %v322 = vadd.f32 %v318, %v321
    %vm323 = vweird.f32 %v317
    %vm324 = vweird.f32 %v318
    %vm325 = vmor %vm323, %vm324
    %v326 = vsel %vm325, %v318, %v322
    %v327 = vand.u32 2147483647, %v317
    %vm328 = vcmp.eq.f32.partialorder %v327, 8.507059e+37
    %v329 = vand.u32 %v317, 2147483648
    %v330 = vor.u32 1.1754944e-38, %v329
    %v331 = vsel %vm328, %v330, %v326
    %v332 = vmul.f32 1.0, %v331
    %v333 = vtanh.pop %v313
    %v334 = vmul.f32 %v332, %v274
    %336 = vrot.lane.b32.xlu0 %v333, 64
    %v337 = vpop.permute.xlu0 %336
    %v339 = vmul.f32 %v332, %v337
    %341 = vrot.lane.b32.xlu0 %v339, 32
    %v342 = vpop.permute.xlu0 %341
    %v344 = vadd.f32 %v334, %v342
    %v345 = vtanh.pop %v344
    %347 = vrot.lane.b32.xlu0 %v345, 64
    %v348 = vpop.permute.xlu0 %347
    %v350 = vmul.f32 %v332, %v348
    %352 = vrot.lane.b32.xlu0 %v350, 32
    %v353 = vpop.permute.xlu0 %352
    %355 = vst.msk [vmem:[#allocation3 + $0x3] sm:$0x1] %vm144, %v353
    %v356 = vld [vmem:[#allocation2 + $0x4] sm:$0x1]
    %v357 = vld [vmem:[%s4] sm:$0xff]
    %v358 = vld [vmem:[%s4 + $0x8] sm:$0xff]
    %v359 = vld [vmem:[%s4 + $0x10] sm:$0xff]
    %v360 = vld [vmem:[%s4 + $0x18] sm:$0xff]
    %v361 = vsel %vm73, %v353, 0
    %363 = vmatpush.msra.mxu0 0.0
    %364 = vmatpush.msra.mxu0 0.0
    %365 = vmatpush.msra.mxu0 0.0
    %366 = vmatpush.msra.mxu0 0.0
    %367 = vmatpush.msra.mxu0 0.0
    %368 = vmatpush.msra.mxu0 0.0
    %369 = vmatpush.msra.mxu0 0.0
    %370 = vmatpush.msra.mxu0 0.0
    %371 = vmatpush.msra.mxu0 0.0
    %372 = vmatpush.msra.mxu0 0.0
    %373 = vmatpush.msra.mxu0 0.0
    %374 = vmatpush.msra.mxu0 0.0
    %375 = vmatpush.msra.mxu0 %v360
    %376 = vmatpush.msra.mxu0 %v359
    %377 = vmatpush.msra.mxu0 %v358
    %378 = vmatpush.msra.mxu0 %v357
    %379 = vmatmul.f32.gmra.mxu0 %v361
    %v380 = vpop.f32.mrf.mxu0
    %v381 = vadd.f32 0.0, %v380
    %382 = vdwg.mxu0
    %v383 = vadd.f32 %v356, %v381
    %v384 = vxor.u32 %v383, 2147483648
    %v385 = vmul.f32 %v384, 1.442695
    %v386 = vpow.pop %v385
    %v387 = vadd.f32 %v386, 1.0
    %v388 = vrcp.pop %v387
    %v389 = vmul.f32 %v387, %v388
    %v390 = vsub.f32 1.0, %v389
    %v391 = vmul.f32 %v388, %v390
    %v392 = vadd.f32 %v388, %v391
    %vm393 = vweird.f32 %v387
    %vm394 = vweird.f32 %v388
    %vm395 = vmor %vm393, %vm394
    %v396 = vsel %vm395, %v388, %v392
    %v397 = vand.u32 2147483647, %v387
    %vm398 = vcmp.eq.f32.partialorder %v397, 8.507059e+37
    %v399 = vand.u32 %v387, 2147483648
    %v400 = vor.u32 1.1754944e-38, %v399
    %v401 = vsel %vm398, %v400, %v396
    %v402 = vmul.f32 1.0, %v401
    %v403 = vtanh.pop %v383
    %v404 = vmul.f32 %v402, %v344
    %406 = vrot.lane.b32.xlu0 %v403, 64
    %v407 = vpop.permute.xlu0 %406
    %v409 = vmul.f32 %v402, %v407
    %411 = vrot.lane.b32.xlu0 %v409, 32
    %v412 = vpop.permute.xlu0 %411
    %v414 = vadd.f32 %v404, %v412
    %v415 = vtanh.pop %v414
    %417 = vrot.lane.b32.xlu0 %v415, 64
    %v418 = vpop.permute.xlu0 %417
    %v420 = vmul.f32 %v402, %v418
    %422 = vrot.lane.b32.xlu0 %v420, 32
    %v423 = vpop.permute.xlu0 %422
    %425 = vst.msk [vmem:[#allocation3 + $0x4] sm:$0x1] %vm144, %v423
    %v426 = vld [vmem:[#allocation2 + $0x5] sm:$0x1]
    %v427 = vld [vmem:[%s4] sm:$0xff]
    %v428 = vld [vmem:[%s4 + $0x8] sm:$0xff]
    %v429 = vld [vmem:[%s4 + $0x10] sm:$0xff]
    %v430 = vld [vmem:[%s4 + $0x18] sm:$0xff]
    %v431 = vsel %vm73, %v423, 0
    %433 = vmatpush.msra.mxu0 0.0
    %434 = vmatpush.msra.mxu0 0.0
    %435 = vmatpush.msra.mxu0 0.0
    %436 = vmatpush.msra.mxu0 0.0
    %437 = vmatpush.msra.mxu0 0.0
    %438 = vmatpush.msra.mxu0 0.0
    %439 = vmatpush.msra.mxu0 0.0
    %440 = vmatpush.msra.mxu0 0.0
    %441 = vmatpush.msra.mxu0 0.0
    %442 = vmatpush.msra.mxu0 0.0
    %443 = vmatpush.msra.mxu0 0.0
    %444 = vmatpush.msra.mxu0 0.0
    %445 = vmatpush.msra.mxu0 %v430
    %446 = vmatpush.msra.mxu0 %v429
    %447 = vmatpush.msra.mxu0 %v428
    %448 = vmatpush.msra.mxu0 %v427
    %449 = vmatmul.f32.gmra.mxu0 %v431
    %v450 = vpop.f32.mrf.mxu0
    %v451 = vadd.f32 0.0, %v450
    %452 = vdwg.mxu0
    %v453 = vadd.f32 %v426, %v451
    %v454 = vxor.u32 %v453, 2147483648
    %v455 = vmul.f32 %v454, 1.442695
    %v456 = vpow.pop %v455
    %v457 = vadd.f32 %v456, 1.0
    %v458 = vrcp.pop %v457
    %v459 = vmul.f32 %v457, %v458
    %v460 = vsub.f32 1.0, %v459
    %v461 = vmul.f32 %v458, %v460
    %v462 = vadd.f32 %v458, %v461
    %vm463 = vweird.f32 %v457
    %vm464 = vweird.f32 %v458
    %vm465 = vmor %vm463, %vm464
    %v466 = vsel %vm465, %v458, %v462
    %v467 = vand.u32 2147483647, %v457
    %vm468 = vcmp.eq.f32.partialorder %v467, 8.507059e+37
    %v469 = vand.u32 %v457, 2147483648
    %v470 = vor.u32 1.1754944e-38, %v469
    %v471 = vsel %vm468, %v470, %v466
    %v472 = vmul.f32 1.0, %v471
    %v473 = vtanh.pop %v453
    %v474 = vmul.f32 %v472, %v414
    %476 = vrot.lane.b32.xlu0 %v473, 64
    %v477 = vpop.permute.xlu0 %476
    %v479 = vmul.f32 %v472, %v477
    %481 = vrot.lane.b32.xlu0 %v479, 32
    %v482 = vpop.permute.xlu0 %481
    %v484 = vadd.f32 %v474, %v482
    %v485 = vtanh.pop %v484
    %487 = vrot.lane.b32.xlu0 %v485, 64
    %v488 = vpop.permute.xlu0 %487
    %v490 = vmul.f32 %v472, %v488
    %492 = vrot.lane.b32.xlu0 %v490, 32
    %v493 = vpop.permute.xlu0 %492
    %495 = vst.msk [vmem:[#allocation3 + $0x5] sm:$0x1] %vm144, %v493
    %v496 = vld [vmem:[#allocation2 + $0x6] sm:$0x1]
    %v497 = vld [vmem:[%s4] sm:$0xff]
    %v498 = vld [vmem:[%s4 + $0x8] sm:$0xff]
    %v499 = vld [vmem:[%s4 + $0x10] sm:$0xff]
    %v500 = vld [vmem:[%s4 + $0x18] sm:$0xff]
    %v501 = vsel %vm73, %v493, 0
    %503 = vmatpush.msra.mxu0 0.0
    %504 = vmatpush.msra.mxu0 0.0
    %505 = vmatpush.msra.mxu0 0.0
    %506 = vmatpush.msra.mxu0 0.0
    %507 = vmatpush.msra.mxu0 0.0
    %508 = vmatpush.msra.mxu0 0.0
    %509 = vmatpush.msra.mxu0 0.0
    %510 = vmatpush.msra.mxu0 0.0
    %511 = vmatpush.msra.mxu0 0.0
    %512 = vmatpush.msra.mxu0 0.0
    %513 = vmatpush.msra.mxu0 0.0
    %514 = vmatpush.msra.mxu0 0.0
    %515 = vmatpush.msra.mxu0 %v500
    %516 = vmatpush.msra.mxu0 %v499
    %517 = vmatpush.msra.mxu0 %v498
    %518 = vmatpush.msra.mxu0 %v497
    %519 = vmatmul.f32.gmra.mxu0 %v501
    %v520 = vpop.f32.mrf.mxu0
    %v521 = vadd.f32 0.0, %v520
    %522 = vdwg.mxu0
    %v523 = vadd.f32 %v496, %v521
    %v524 = vxor.u32 %v523, 2147483648
    %v525 = vmul.f32 %v524, 1.442695
    %v526 = vpow.pop %v525
    %v527 = vadd.f32 %v526, 1.0
    %v528 = vrcp.pop %v527
    %v529 = vmul.f32 %v527, %v528
    %v530 = vsub.f32 1.0, %v529
    %v531 = vmul.f32 %v528, %v530
    %v532 = vadd.f32 %v528, %v531
    %vm533 = vweird.f32 %v527
    %vm534 = vweird.f32 %v528
    %vm535 = vmor %vm533, %vm534
    %v536 = vsel %vm535, %v528, %v532
    %v537 = vand.u32 2147483647, %v527
    %vm538 = vcmp.eq.f32.partialorder %v537, 8.507059e+37
    %v539 = vand.u32 %v527, 2147483648
    %v540 = vor.u32 1.1754944e-38, %v539
    %v541 = vsel %vm538, %v540, %v536
    %v542 = vmul.f32 1.0, %v541
    %v543 = vtanh.pop %v523
    %v544 = vmul.f32 %v542, %v484
    %546 = vrot.lane.b32.xlu0 %v543, 64
    %v547 = vpop.permute.xlu0 %546
    %v549 = vmul.f32 %v542, %v547
    %551 = vrot.lane.b32.xlu0 %v549, 32
    %v552 = vpop.permute.xlu0 %551
    %v554 = vadd.f32 %v544, %v552
    %v555 = vtanh.pop %v554
    %557 = vrot.lane.b32.xlu0 %v555, 64
    %v558 = vpop.permute.xlu0 %557
    %v560 = vmul.f32 %v542, %v558
    %562 = vrot.lane.b32.xlu0 %v560, 32
    %v563 = vpop.permute.xlu0 %562
    %565 = vst.msk [vmem:[#allocation3 + $0x6] sm:$0x1] %vm144, %v563
    %v566 = vld [vmem:[#allocation2 + $0x7] sm:$0x1]
    %v567 = vld [vmem:[%s4] sm:$0xff]
    %v568 = vld [vmem:[%s4 + $0x8] sm:$0xff]
    %v569 = vld [vmem:[%s4 + $0x10] sm:$0xff]
    %v570 = vld [vmem:[%s4 + $0x18] sm:$0xff]
    %v571 = vsel %vm73, %v563, 0
    %573 = vmatpush.msra.mxu0 0.0
    %574 = vmatpush.msra.mxu0 0.0
    %575 = vmatpush.msra.mxu0 0.0
    %576 = vmatpush.msra.mxu0 0.0
    %577 = vmatpush.msra.mxu0 0.0
    %578 = vmatpush.msra.mxu0 0.0
    %579 = vmatpush.msra.mxu0 0.0
    %580 = vmatpush.msra.mxu0 0.0
    %581 = vmatpush.msra.mxu0 0.0
    %582 = vmatpush.msra.mxu0 0.0
    %583 = vmatpush.msra.mxu0 0.0
    %584 = vmatpush.msra.mxu0 0.0
    %585 = vmatpush.msra.mxu0 %v570
    %586 = vmatpush.msra.mxu0 %v569
    %587 = vmatpush.msra.mxu0 %v568
    %588 = vmatpush.msra.mxu0 %v567
    %589 = vmatmul.f32.gmra.mxu0 %v571
    %v590 = vpop.f32.mrf.mxu0
    %v591 = vadd.f32 0.0, %v590
    %592 = vdwg.mxu0
    %v593 = vadd.f32 %v566, %v591
    %v594 = vxor.u32 %v593, 2147483648
    %v595 = vmul.f32 %v594, 1.442695
    %v596 = vpow.pop %v595
    %v597 = vadd.f32 %v596, 1.0
    %v598 = vrcp.pop %v597
    %v599 = vmul.f32 %v597, %v598
    %v600 = vsub.f32 1.0, %v599
    %v601 = vmul.f32 %v598, %v600
    %v602 = vadd.f32 %v598, %v601
    %vm603 = vweird.f32 %v597
    %vm604 = vweird.f32 %v598
    %vm605 = vmor %vm603, %vm604
    %v606 = vsel %vm605, %v598, %v602
    %v607 = vand.u32 2147483647, %v597
    %vm608 = vcmp.eq.f32.partialorder %v607, 8.507059e+37
    %v609 = vand.u32 %v597, 2147483648
    %v610 = vor.u32 1.1754944e-38, %v609
    %v611 = vsel %vm608, %v610, %v606
    %v612 = vmul.f32 1.0, %v611
    %v613 = vtanh.pop %v593
    %v614 = vmul.f32 %v612, %v554
    %616 = vrot.lane.b32.xlu0 %v613, 64
    %v617 = vpop.permute.xlu0 %616
    %v619 = vmul.f32 %v612, %v617
    %621 = vrot.lane.b32.xlu0 %v619, 32
    %v622 = vpop.permute.xlu0 %621
    %v624 = vadd.f32 %v614, %v622
    %v625 = vtanh.pop %v624
    %627 = vrot.lane.b32.xlu0 %v625, 64
    %v628 = vpop.permute.xlu0 %627
    %v630 = vmul.f32 %v612, %v628
    %632 = vrot.lane.b32.xlu0 %v630, 32
    %v633 = vpop.permute.xlu0 %632
    %635 = vst.msk [vmem:[#allocation3 + $0x7] sm:$0x1] %vm144, %v633
    %636 = vst.msk [vmem:[#allocation6] sm:$0x1] %vm144, %v633
    %638 = vrot.lane.b32.xlu0 %v624, 96
    %v639 = vpop.permute.xlu0 %638
    %641 = vst.msk [vmem:[#allocation8] sm:$0x1] %vm144, %v639
    %v642 = vld [vmem:[#allocation3] sm:$0xff]
    %v643 = vld [vmem:[%s6] sm:$0xff]
    %v644 = vld [vmem:[%s6 + $0x8] sm:$0xff]
    %v645 = vld [vmem:[%s6 + $0x10] sm:$0xff]
    %v646 = vld [vmem:[%s6 + $0x18] sm:$0xff]
    %v647 = vld [vmem:[%s7] sm:$0x1]
    %v649 = vperm.slane %v647, 0
    %v652 = vsel %vm73, %v642, 0
    %654 = vmatpush.msra.mxu0 0.0
    %655 = vmatpush.msra.mxu0 0.0
    %656 = vmatpush.msra.mxu0 0.0
    %657 = vmatpush.msra.mxu0 0.0
    %658 = vmatpush.msra.mxu0 0.0
    %659 = vmatpush.msra.mxu0 0.0
    %660 = vmatpush.msra.mxu0 0.0
    %661 = vmatpush.msra.mxu0 0.0
    %662 = vmatpush.msra.mxu0 0.0
    %663 = vmatpush.msra.mxu0 0.0
    %664 = vmatpush.msra.mxu0 0.0
    %665 = vmatpush.msra.mxu0 0.0
    %666 = vmatpush.msra.mxu0 %v646
    %667 = vmatpush.msra.mxu0 %v645
    %668 = vmatpush.msra.mxu0 %v644
    %669 = vmatpush.msra.mxu0 %v643
    %670 = vmatmul.f32.gmra.mxu0 %v652
    %v671 = vpop.f32.mrf.mxu0
    %v672 = vadd.f32 %v649, %v671
    %673 = vdwg.mxu0
    %v674 = vmax.f32 %v672, 0.0
    %v675 = vsel %vm73, %v674, -inf
    %676 = vmax.xlane.f32.xlu0 %v675
    %v677 = vpop.xlane.xlu0 %676
    %v678 = vsub.f32 %v674, %v677
    %v679 = vmul.f32 %v678, 1.442695
    %v680 = vpow.pop %v679
    %v681 = vsel %vm73, %v680, 0.0
    %682 = vadd.xlane.f32.xlu0 %v681
    %v683 = vpop.xlane.xlu0 %682
    %v684 = vlog2.pop %v683
    %v685 = vmul.f32 %v684, 0.6931472
    %v686 = vadd.f32 %v677, %v685
    %v687 = vsub.f32 %v674, %v686
    %688 = vst.msk [vmem:[#allocation4] sm:$0xff] %vm73, %v687
    // Predicated region
    $region34: #{name_model_forward.1} parent=1 // pred_check
      _
    $region35: #{name_model_forward.1} parent=1 // pred_check_branch
      %690 = sbr.rel (0) target = $region37
    $region36: #{name_model_forward.1} parent=1 // pred_region
      %692 = vsyncadd [#allocation5], 0
      %s694 = sshll.u32 [#allocation4], 4
      %s695 = int_to_ptr.vmem [resolvable:$true] %s694
      %s696 = sshll.u32 %s8, 4
      %s697 = int_to_ptr.hbm [resolvable:$true] %s696
      %699 = dma.vmem_to_hbm [thread:$0]  %s695, 128, %s697, [#allocation5]
    $region37: #{name_model_forward.1} parent=1 // pred_fallthru
      _
    // Predicated region
    $region38: #{name_model_forward.1} parent=1 // pred_check
      _
    $region39: #{name_model_forward.1} parent=1 // pred_check_branch
      %701 = sbr.rel (0) target = $region41
    $region40: #{name_model_forward.1} parent=1 // pred_region
      %703 = vsyncadd [#allocation7], 0
      %s705 = sshll.u32 [#allocation6], 4
      %s706 = int_to_ptr.vmem [resolvable:$true] %s705
      %s707 = sshll.u32 %s9, 4
      %s708 = int_to_ptr.hbm [resolvable:$true] %s707
      %710 = dma.vmem_to_hbm [thread:$0]  %s706, 16, %s708, [#allocation7]
    $region41: #{name_model_forward.1} parent=1 // pred_fallthru
      _
    // Predicated region
    $region42: #{name_model_forward.1} parent=1 // pred_check
      _
    $region43: #{name_model_forward.1} parent=1 // pred_check_branch
      %712 = sbr.rel (0) target = $region45
    $region44: #{name_model_forward.1} parent=1 // pred_region
      %714 = vsyncadd [#allocation7], 0
      %s716 = sshll.u32 [#allocation8], 4
      %s717 = int_to_ptr.vmem [resolvable:$true] %s716
      %s718 = sshll.u32 %s10, 4
      %s719 = int_to_ptr.hbm [resolvable:$true] %s718
      %721 = dma.vmem_to_hbm [thread:$0]  %s717, 16, %s719, [#allocation7]
    $region45: #{name_model_forward.1} parent=1 // pred_fallthru
      _
    // Predicated region
    $region46: #{name_model_forward.1} parent=1 // pred_check
      _
    $region47: #{name_model_forward.1} parent=1 // pred_check_branch
      %723 = sbr.rel (0) target = $region49
    $region48: #{name_model_forward.1} parent=1 // pred_region
      %725 = dma.done [#allocation5], 128
    $region49: #{name_model_forward.1} parent=1 // pred_fallthru
      _
    // Predicated region
    $region50: #{name_model_forward.1} parent=1 // pred_check
      _
    $region51: #{name_model_forward.1} parent=1 // pred_check_branch
      %727 = sbr.rel (0) target = $region53
    $region52: #{name_model_forward.1} parent=1 // pred_region
      %729 = dma.done [#allocation7], 16
    $region53: #{name_model_forward.1} parent=1 // pred_fallthru
      _
    // Predicated region
    $region54: #{name_model_forward.1} parent=1 // pred_check
      _
    $region55: #{name_model_forward.1} parent=1 // pred_check_branch
      %731 = sbr.rel (0) target = $region57
    $region56: #{name_model_forward.1} parent=1 // pred_region
      %733 = dma.done [#allocation7], 16
    $region57: #{name_model_forward.1} parent=1 // pred_fallthru
      _
    %734 = vsyncpa [#allocation5], 1
    %735 = vsyncpa [#allocation7], 1

</llo_original>
